<compile_context>
chip_gen: v5e
topology: v5e:2x2
jax: 0.10.0
libtpu: 0.0.40
codegen_flags: <defaults>
</compile_context>

<pallas_src>
import functools

import jax
import jax.numpy as jnp
from jax.experimental import pallas as pl
from jax.experimental.pallas import tpu as pltpu


_LANE = 128
_SUBLANE = 8


def _round_up(x, m):
    return (x + m - 1) // m * m


def _cdiv(a, b):
    return (a + b - 1) // b


def _param_row_offsets(D, E, H1, H2):
    """Row offsets of each layer inside the packed weight / bias slabs."""
    Ep = _round_up(E, _SUBLANE)
    Dp = _round_up(D, _SUBLANE)
    H1p = _round_up(H1, _SUBLANE)
    H2p = _round_up(H2, _SUBLANE)
    r_we = 0
    r_wad = r_we + Ep
    r_wv1 = r_wad + Dp
    r_wv2 = r_wv1 + H1p
    r_wv3 = r_wv2 + H2p
    return r_we, r_wad, r_wv1, r_wv2, r_wv3


def _sigmoid(x):
    # Exact: softmax([z0, z1], dim=1)[:, 1] == sigmoid(z1 - z0) == 0.5*(tanh(x/2)+1).
    # Single EUP tanh, no VALU divide.
    return 0.5 * (jnp.tanh(0.5 * x) + 1.0)


# ----------------------------- Pallas kernels ------------------------------ #

def _attention_critic_kernel(obs_t_ref, w_ref, b_ref, out_ref, *, D, E, H1, H2):
    """Feature-major fused forward.  Every tensor is [features, batch_tile]."""
    r_we, r_wad, r_wv1, r_wv2, r_wv3 = _param_row_offsets(D, E, H1, H2)
    Dp = _round_up(D, _SUBLANE)
    TB = out_ref.shape[1]

    obs_t = obs_t_ref[...]                                          # [D, TB]

    # e = tanh(lineare(obs))
    e_t = jnp.tanh(
        jnp.dot(w_ref[r_we:r_we + E, 0:D], obs_t,
                preferred_element_type=jnp.float32)
        + b_ref[r_we:r_we + E, :])                                  # [E, TB]

    # All D attention heads fused: softmax([z0, z1], dim=1)[:, 1] == sigmoid(z1-z0)
    z = (jnp.dot(w_ref[r_wad:r_wad + D, 0:E], e_t,
                 preferred_element_type=jnp.float32)
         + b_ref[r_wad:r_wad + D, :])                               # [D, TB]
    attn_t = _sigmoid(z)

    sa_t = obs_t * attn_t                                           # [D, TB]

    # v_net: Linear -> Tanh -> Linear -> (Dropout: eval no-op) -> Tanh -> Linear
    h = jnp.tanh(
        jnp.dot(w_ref[r_wv1:r_wv1 + H1, 0:D], sa_t,
                preferred_element_type=jnp.float32)
        + b_ref[r_wv1:r_wv1 + H1, :])                               # [H1, TB]
    h = jnp.tanh(
        jnp.dot(w_ref[r_wv2:r_wv2 + H2, 0:H1], h,
                preferred_element_type=jnp.float32)
        + b_ref[r_wv2:r_wv2 + H2, :])                               # [H2, TB]
    v = (jnp.dot(w_ref[r_wv3:r_wv3 + 1, 0:H2], h,
                 preferred_element_type=jnp.float32)
         + b_ref[r_wv3:r_wv3 + 1, :])                               # [1, TB]

    # ONE unmasked, lane-dense, full-width store: rows [0:D] = attention, rows
    # [Dp:Dp+8] = v (replicated).  No zero-fill pass, no masked partial stores.
    parts = [attn_t]
    if Dp > D:
        parts.append(jnp.zeros((Dp - D, TB), jnp.float32))
    parts.append(jnp.broadcast_to(v, (_SUBLANE, TB)))
    out_ref[...] = jnp.concatenate(parts, axis=0)                   # [Dp + 8, TB]


def _v_only_kernel(obs_t_ref, w_ref, b_ref, out_ref, *, D, E, H1, H2):
    """with_attention=False path: v = v_net(obs).  Feature-major."""
    _, _, r_wv1, r_wv2, r_wv3 = _param_row_offsets(D, E, H1, H2)
    TB = out_ref.shape[1]

    h = jnp.tanh(
        jnp.dot(w_ref[r_wv1:r_wv1 + H1, 0:D], obs_t_ref[...],
                preferred_element_type=jnp.float32)
        + b_ref[r_wv1:r_wv1 + H1, :])
    h = jnp.tanh(
        jnp.dot(w_ref[r_wv2:r_wv2 + H2, 0:H1], h,
                preferred_element_type=jnp.float32)
        + b_ref[r_wv2:r_wv2 + H2, :])
    v = (jnp.dot(w_ref[r_wv3:r_wv3 + 1, 0:H2], h,
                 preferred_element_type=jnp.float32)
         + b_ref[r_wv3:r_wv3 + 1, :])                               # [1, TB]

    out_ref[...] = jnp.broadcast_to(v, (_SUBLANE, TB))              # one dense store


# ------------------------------ Param init --------------------------------- #

def _kaiming_normal(key, out_dim, in_dim):
    # torch.nn.init.kaiming_normal_ default: fan_in mode, gain = sqrt(2)
    std = jnp.sqrt(2.0 / in_dim)
    return jax.random.normal(key, (out_dim, in_dim), dtype=jnp.float32) * std


def _linear_default_bias(key, out_dim, in_dim):
    # torch.nn.Linear default bias init: U(-1/sqrt(fan_in), 1/sqrt(fan_in))
    bound = 1.0 / jnp.sqrt(jnp.float32(in_dim))
    return jax.random.uniform(
        key, (out_dim,), dtype=jnp.float32, minval=-bound, maxval=bound)


def init_attention_critic_params(key, obs_dim, hidden_sizes, e_outputs):
    keys = jax.random.split(key, 8 + 2 * obs_dim)
    p = {}
    # lineare: Linear(obs_dim, e_outputs), kaiming weight, default bias
    p["We"] = _kaiming_normal(keys[0], e_outputs, obs_dim)             # [E, D]
    p["be"] = _linear_default_bias(keys[1], e_outputs, obs_dim)        # [E]

    # attention_layers: obs_dim x Linear(e_outputs, 2), kaiming weight, default bias
    wa, ba = [], []
    for i in range(obs_dim):
        wa.append(_kaiming_normal(keys[2 + 2 * i], 2, e_outputs))      # [2, E]
        ba.append(_linear_default_bias(keys[3 + 2 * i], 2, e_outputs)) # [2]
    p["Wa"] = jnp.stack(wa)                                            # [D, 2, E]
    p["ba"] = jnp.stack(ba)                                            # [D, 2]

    # v_net: [obs_dim] + hidden_sizes + [1]; kaiming weights, zero biases
    h1, h2 = hidden_sizes
    koff = 2 + 2 * obs_dim
    p["Wv1"] = _kaiming_normal(keys[koff + 0], h1, obs_dim)
    p["bv1"] = jnp.zeros((h1,), jnp.float32)
    p["Wv2"] = _kaiming_normal(keys[koff + 1], h2, h1)
    p["bv2"] = jnp.zeros((h2,), jnp.float32)
    p["Wv3"] = _kaiming_normal(keys[koff + 2], 1, h2)
    p["bv3"] = jnp.zeros((1,), jnp.float32)
    return p


# ----------------------- One-time layout preparation ------------------------ #

def prepare_attention_critic_params(params):
    """Hoisted layout work (run ONCE, e.g. after init / each optimizer step):
    fuse the D attention heads and pack all weights/biases into two slabs.
    PyTorch [out, in] weights already have the feature-major orientation."""
    E, D = params["We"].shape
    H1 = params["Wv1"].shape[0]
    H2 = params["Wv2"].shape[0]
    WP = _round_up(max(D, E, H1, H2), _LANE)        # lane-dense weight slab width

    # softmax([z0, z1])[:, 1] == sigmoid(z1 - z0): fold the D heads into one matmul.
    wa_diff = params["Wa"][:, 1, :] - params["Wa"][:, 0, :]            # [D, E]
    ba_diff = params["ba"][:, 1] - params["ba"][:, 0]                  # [D]

    def pad_w(w):                                   # -> [round_up(rows, 8), WP]
        r, c = w.shape
        return jnp.pad(w, ((0, _round_up(r, _SUBLANE) - r), (0, WP - c)))

    def pad_b(b):                                   # -> [round_up(n, 8), 1]
        n = b.shape[0]
        return jnp.pad(b, (0, _round_up(n, _SUBLANE) - n)).reshape(-1, 1)

    w_slab = jnp.concatenate(
        [pad_w(params["We"]), pad_w(wa_diff), pad_w(params["Wv1"]),
         pad_w(params["Wv2"]), pad_w(params["Wv3"])], axis=0)          # [RW, WP]
    b_slab = jnp.concatenate(
        [pad_b(params["be"]), pad_b(ba_diff), pad_b(params["bv1"]),
         pad_b(params["bv2"]), pad_b(params["bv3"])], axis=0)          # [RW, 1]

    return {"w_slab": w_slab, "b_slab": b_slab, "dims": (D, E, H1, H2)}


# ------------------------------- Wrapper ------------------------------------ #

def _choose_batch_tiling(B, target_rows=2048):
    """Pick (TB, B_pad, n_tiles): lane-aligned batch tile that amortises the
    ~0.35us per-grid-step overhead, keeps padding waste small, and gives the
    'parallel' grid axis >= 2 steps for mid/large batches (feeds both v7x TCs)."""
    b_min = _round_up(max(B, 1), _LANE)
    n = max(1, _cdiv(b_min, target_rows))
    if n == 1 and b_min >= 2 * _LANE:
        n = 2
    tb = _round_up(_cdiv(b_min, n), _LANE)
    n = _cdiv(b_min, tb)
    return tb, n * tb, n


def attention_critic_forward(obs, prep, *, with_attention=True):
    """obs: [B, obs_dim] float32; prep from prepare_attention_critic_params.
    Returns (v [B], Attention [B, obs_dim] or None)."""
    return _forward_jit(obs, prep["w_slab"], prep["b_slab"],
                        dims=prep["dims"], with_attention=with_attention)


@functools.partial(jax.jit, static_argnames=("dims", "with_attention"))
def _forward_jit(obs, w_slab, b_slab, *, dims, with_attention):
    D, E, H1, H2 = dims
    B = obs.shape[0]
    TB, B_pad, n_tiles = _choose_batch_tiling(B)
    Dp = _round_up(D, _SUBLANE)

    # Only per-call layout op: [B, D] -> [D, B_pad] so the batch rides the
    # 128-wide lane axis inside the kernel (feature-major everywhere).
    obs_t = jnp.pad(obs.T, ((0, 0), (0, B_pad - B)))

    cparams = pltpu.CompilerParams(dimension_semantics=("parallel",))
    in_specs = [
        pl.BlockSpec((D, TB), lambda i: (0, i)),          # obs, batch-tiled on lanes
        pl.BlockSpec(w_slab.shape, lambda i: (0, 0)),     # packed weights (resident)
        pl.BlockSpec(b_slab.shape, lambda i: (0, 0)),     # packed biases  (resident)
    ]
    param_bytes = 4 * (w_slab.size + b_slab.size)

    if not with_attention:
        out = pl.pallas_call(
            functools.partial(_v_only_kernel, D=D, E=E, H1=H1, H2=H2),
            out_shape=jax.ShapeDtypeStruct((_SUBLANE, B_pad), jnp.float32),
            grid=(n_tiles,),
            in_specs=in_specs,
            out_specs=pl.BlockSpec((_SUBLANE, TB), lambda i: (0, i)),
            compiler_params=cparams,
            cost_estimate=pl.CostEstimate(
                flops=2 * B_pad * (H1 * D + H2 * H1 + H2),
                transcendentals=B_pad * (H1 + H2),
                bytes_accessed=4 * (D + _SUBLANE) * B_pad + param_bytes),
        )(obs_t, w_slab, b_slab)
        return out[0, :B], None

    OUT_ROWS = Dp + _SUBLANE                 # rows [0:D] = attention, row Dp = v
    out = pl.pallas_call(
        functools.partial(_attention_critic_kernel, D=D, E=E, H1=H1, H2=H2),
        out_shape=jax.ShapeDtypeStruct((OUT_ROWS, B_pad), jnp.float32),
        grid=(n_tiles,),
        in_specs=in_specs,
        out_specs=pl.BlockSpec((OUT_ROWS, TB), lambda i: (0, i)),
        compiler_params=cparams,
        cost_estimate=pl.CostEstimate(
            flops=2 * B_pad * (2 * E * D + H1 * D + H2 * H1 + H2),
            transcendentals=B_pad * (E + D + H1 + H2),
            bytes_accessed=4 * (D + OUT_ROWS) * B_pad + param_bytes),
    )(obs_t, w_slab, b_slab)

    v = out[Dp, :B]
    attn = out[:D, :B].T
    return v, attn


# ----------------- Pure-JAX reference (original formulation) ---------------- #

def _reference_forward(obs, params):
    e = jnp.tanh(obs @ params["We"].T + params["be"])
    z = jnp.einsum("be,dce->bdc", e, params["Wa"]) + params["ba"][None]   # [B, D, 2]
    attn = jax.nn.softmax(z, axis=-1)[..., 1]                             # [B, D]
    sa = obs * attn
    h = jnp.tanh(sa @ params["Wv1"].T + params["bv1"])
    h = jnp.tanh(h @ params["Wv2"].T + params["bv2"])
    v = (h @ params["Wv3"].T + params["bv3"]).squeeze(-1)
    return v, attn


def _reference_v_only(obs, params):
    h = jnp.tanh(obs @ params["Wv1"].T + params["bv1"])
    h = jnp.tanh(h @ params["Wv2"].T + params["bv2"])
    return (h @ params["Wv3"].T + params["bv3"]).squeeze(-1)


# --------------------------------- Main ------------------------------------- #

if __name__ == "__main__":
    B = 8
    OBS_DIM = 8
    E_OUTPUTS = 32
    HIDDEN = (32, 32)

    key = jax.random.PRNGKey(0)
    pkey, okey, okey2 = jax.random.split(key, 3)
    params = init_attention_critic_params(pkey, OBS_DIM, HIDDEN, E_OUTPUTS)
    prep = prepare_attention_critic_params(params)     # one-time layout work
    obs = jax.random.normal(okey, (B, OBS_DIM), dtype=jnp.float32)

    v, attn = attention_critic_forward(obs, prep, with_attention=True)
    jax.block_until_ready((v, attn))

    v_ref, attn_ref = _reference_forward(obs, params)
    assert v.shape == (B,) and attn.shape == (B, OBS_DIM)
    assert jnp.allclose(v, v_ref, atol=1e-5, rtol=1e-5)
    assert jnp.allclose(attn, attn_ref, atol=1e-5, rtol=1e-5)

    # with_attention=False branch.
    v0, attn0 = attention_critic_forward(obs, prep, with_attention=False)
    jax.block_until_ready(v0)
    assert attn0 is None and v0.shape == (B,)
    assert jnp.allclose(v0, _reference_v_only(obs, params), atol=1e-5, rtol=1e-5)

    # Multi-tile grid + batch-padding path (exercises the >=2-step parallel axis).
    B2 = 300
    obs2 = jax.random.normal(okey2, (B2, OBS_DIM), dtype=jnp.float32)
    v2, attn2 = attention_critic_forward(obs2, prep, with_attention=True)
    jax.block_until_ready((v2, attn2))
    v2_ref, attn2_ref = _reference_forward(obs2, params)
    assert v2.shape == (B2,) and attn2.shape == (B2, OBS_DIM)
    assert jnp.allclose(v2, v2_ref, atol=1e-5, rtol=1e-5)
    assert jnp.allclose(attn2, attn2_ref, atol=1e-5, rtol=1e-5)

    print("KERNEL_OK")
</pallas_src>

<mosaic_0001>
module attributes {stable_mosaic.version = 11 : i64} {
  func.func @_attention_critic_kernel(%arg0: i32, %arg1: memref<8x128xf32, #tpu.memory_space<vmem>>, %arg2: memref<112x128xf32, #tpu.memory_space<vmem>>, %arg3: memref<112x1xf32, #tpu.memory_space<vmem>>, %arg4: memref<16x128xf32, #tpu.memory_space<vmem>>) attributes {dimension_semantics = [#tpu.dimension_semantics<parallel>], iteration_bounds = array<i64: 1>, scalar_prefetch = 0 : i64, scratch_operands = 0 : i64, tpu.core_type = #tpu.core_type<tc>, window_params = [{transform_indices = @transform_0, window_bounds = array<i64: 8, 128>}, {pipeline_mode = #tpu.pipeline_mode<synchronous>, transform_indices = @transform_1, window_bounds = array<i64: 112, 128>}, {pipeline_mode = #tpu.pipeline_mode<synchronous>, transform_indices = @transform_2, window_bounds = array<i64: 112, 1>}, {transform_indices = @transform_3, window_bounds = array<i64: 16, 128>}]} {
    %c0 = arith.constant 0 : index
    %c0_0 = arith.constant 0 : index
    %0 = vector.load %arg1[%c0, %c0_0] : memref<8x128xf32, #tpu.memory_space<vmem>>, vector<8x128xf32>
    %c0_1 = arith.constant 0 : index
    %c0_2 = arith.constant 0 : index
    %1 = vector.load %arg2[%c0_1, %c0_2] : memref<112x128xf32, #tpu.memory_space<vmem>>, vector<32x8xf32>
    %cst = arith.constant dense<0.000000e+00> : vector<32x128xf32>
    %2 = tpu.matmul %1, %0, %cst {dimension_numbers = #tpu.dot_dimension_numbers<[1], [0], [0], [1], [0, 0, 1, 1], [], []>} : vector<32x8xf32>, vector<8x128xf32>, vector<32x128xf32> -> vector<32x128xf32>
    %c0_3 = arith.constant 0 : index
    %c0_4 = arith.constant 0 : index
    %3 = vector.load %arg3[%c0_3, %c0_4] : memref<112x1xf32, #tpu.memory_space<vmem>>, vector<32x1xf32>
    %4 = vector.broadcast %3 : vector<32x1xf32> to vector<32x128xf32>
    %5 = arith.addf %2, %4 : vector<32x128xf32>
    %6 = math.tanh %5 : vector<32x128xf32>
    %c32 = arith.constant 32 : index
    %c0_5 = arith.constant 0 : index
    %7 = vector.load %arg2[%c32, %c0_5] : memref<112x128xf32, #tpu.memory_space<vmem>>, vector<8x32xf32>
    %cst_6 = arith.constant dense<0.000000e+00> : vector<8x128xf32>
    %8 = tpu.matmul %7, %6, %cst_6 {dimension_numbers = #tpu.dot_dimension_numbers<[1], [0], [0], [1], [0, 0, 1, 1], [], []>} : vector<8x32xf32>, vector<32x128xf32>, vector<8x128xf32> -> vector<8x128xf32>
    %c32_7 = arith.constant 32 : index
    %c0_8 = arith.constant 0 : index
    %9 = vector.load %arg3[%c32_7, %c0_8] : memref<112x1xf32, #tpu.memory_space<vmem>>, vector<8x1xf32>
    %10 = vector.broadcast %9 : vector<8x1xf32> to vector<8x128xf32>
    %11 = arith.addf %8, %10 : vector<8x128xf32>
    %cst_9 = arith.constant 5.000000e-01 : f32
    %12 = vector.broadcast %cst_9 : f32 to vector<8x128xf32>
    %13 = arith.mulf %12, %11 : vector<8x128xf32>
    %14 = math.tanh %13 : vector<8x128xf32>
    %cst_10 = arith.constant 1.000000e+00 : f32
    %15 = vector.broadcast %cst_10 : f32 to vector<8x128xf32>
    %16 = arith.addf %14, %15 : vector<8x128xf32>
    %cst_11 = arith.constant 5.000000e-01 : f32
    %17 = vector.broadcast %cst_11 : f32 to vector<8x128xf32>
    %18 = arith.mulf %17, %16 : vector<8x128xf32>
    %19 = arith.mulf %0, %18 : vector<8x128xf32>
    %c40 = arith.constant 40 : index
    %c0_12 = arith.constant 0 : index
    %20 = vector.load %arg2[%c40, %c0_12] : memref<112x128xf32, #tpu.memory_space<vmem>>, vector<32x8xf32>
    %cst_13 = arith.constant dense<0.000000e+00> : vector<32x128xf32>
    %21 = tpu.matmul %20, %19, %cst_13 {dimension_numbers = #tpu.dot_dimension_numbers<[1], [0], [0], [1], [0, 0, 1, 1], [], []>} : vector<32x8xf32>, vector<8x128xf32>, vector<32x128xf32> -> vector<32x128xf32>
    %c40_14 = arith.constant 40 : index
    %c0_15 = arith.constant 0 : index
    %22 = vector.load %arg3[%c40_14, %c0_15] : memref<112x1xf32, #tpu.memory_space<vmem>>, vector<32x1xf32>
    %23 = vector.broadcast %22 : vector<32x1xf32> to vector<32x128xf32>
    %24 = arith.addf %21, %23 : vector<32x128xf32>
    %25 = math.tanh %24 : vector<32x128xf32>
    %c72 = arith.constant 72 : index
    %c0_16 = arith.constant 0 : index
    %26 = vector.load %arg2[%c72, %c0_16] : memref<112x128xf32, #tpu.memory_space<vmem>>, vector<32x32xf32>
    %cst_17 = arith.constant dense<0.000000e+00> : vector<32x128xf32>
    %27 = tpu.matmul %26, %25, %cst_17 {dimension_numbers = #tpu.dot_dimension_numbers<[1], [0], [0], [1], [0, 0, 1, 1], [], []>} : vector<32x32xf32>, vector<32x128xf32>, vector<32x128xf32> -> vector<32x128xf32>
    %c72_18 = arith.constant 72 : index
    %c0_19 = arith.constant 0 : index
    %28 = vector.load %arg3[%c72_18, %c0_19] : memref<112x1xf32, #tpu.memory_space<vmem>>, vector<32x1xf32>
    %29 = vector.broadcast %28 : vector<32x1xf32> to vector<32x128xf32>
    %30 = arith.addf %27, %29 : vector<32x128xf32>
    %31 = math.tanh %30 : vector<32x128xf32>
    %c104 = arith.constant 104 : index
    %c0_20 = arith.constant 0 : index
    %32 = vector.load %arg2[%c104, %c0_20] : memref<112x128xf32, #tpu.memory_space<vmem>>, vector<1x32xf32>
    %cst_21 = arith.constant dense<0.000000e+00> : vector<1x128xf32>
    %33 = tpu.matmul %32, %31, %cst_21 {dimension_numbers = #tpu.dot_dimension_numbers<[1], [0], [0], [1], [0, 0, 1, 1], [], []>} : vector<1x32xf32>, vector<32x128xf32>, vector<1x128xf32> -> vector<1x128xf32>
    %c104_22 = arith.constant 104 : index
    %c0_23 = arith.constant 0 : index
    %34 = vector.load %arg3[%c104_22, %c0_23] : memref<112x1xf32, #tpu.memory_space<vmem>>, vector<1x1xf32>
    %35 = vector.broadcast %34 : vector<1x1xf32> to vector<1x128xf32>
    %36 = arith.addf %33, %35 : vector<1x128xf32>
    %37 = vector.shape_cast %36 : vector<1x128xf32> to vector<1x128xf32>
    %38 = vector.broadcast %37 : vector<1x128xf32> to vector<8x128xf32>
    %39 = tpu.concatenate %18, %38 in 0 : vector<8x128xf32>, vector<8x128xf32> -> vector<16x128xf32>
    %c0_24 = arith.constant 0 : index
    %c0_25 = arith.constant 0 : index
    %40 = vector.load %arg4[%c0_24, %c0_25] : memref<16x128xf32, #tpu.memory_space<vmem>>, vector<16x128xf32>
    tpu.vector_store %arg4[%c0_24, %c0_25], %39 {strides = array<i32>} : memref<16x128xf32, #tpu.memory_space<vmem>>, vector<16x128xf32>,
    return
  }
  func.func @transform_0(%arg0: i32) -> (i32, i32) {
    %c0_i32 = arith.constant 0 : i32
    %c0_i32_0 = arith.constant 0 : i32
    return %c0_i32, %arg0 : i32, i32
  }
  func.func @transform_1(%arg0: i32) -> (i32, i32) {
    %c0_i32 = arith.constant 0 : i32
    %c0_i32_0 = arith.constant 0 : i32
    %c0_i32_1 = arith.constant 0 : i32
    return %c0_i32, %c0_i32_0 : i32, i32
  }
  func.func @transform_2(%arg0: i32) -> (i32, i32) {
    %c0_i32 = arith.constant 0 : i32
    %c0_i32_0 = arith.constant 0 : i32
    %c0_i32_1 = arith.constant 0 : i32
    return %c0_i32, %c0_i32_0 : i32, i32
  }
  func.func @transform_3(%arg0: i32) -> (i32, i32) {
    %c0_i32 = arith.constant 0 : i32
    %c0_i32_0 = arith.constant 0 : i32
    return %c0_i32, %arg0 : i32, i32
  }
}

</mosaic_0001>

<llo_original>
// kernel: _forward_jit.1
$region0: #{_forward_jit.1}
  #allocation0 [shape = 'u32[]', space=smem, size = 0x4, offset = 0x4, fixed_abs, tag = 'smem constant byte address 0x4 - core index']
  #allocation1 [shape = 'u32[72,128]{1,0:T(1,128)}', space=vmem, size = 0x9000, scoped, tag = 'internal scratch']
  %s0 = inlined_call_operand.vmem [shape: f32[8,128], index: 0, kind: input, shape index: {}]
  %s1 = inlined_call_operand.vmem [shape: f32[112,128], index: 1, kind: input, shape index: {}]
  %s2 = inlined_call_operand.vmem [shape: f32[112,1], index: 2, kind: input, shape index: {}]
  %s3 = inlined_call_operand.vmem [shape: f32[16,128], index: 3, kind: output, shape index: {}]
  %s4 = sld [smem:[#allocation0]]
  $region22: #{_forward_jit.1} parent=0
    _
  %s6 = ssub.s32 1, %s4
  %s7 = scalar_select 0, %s6, %s4
  // Predicated region
  $region2: #{_forward_jit.1} parent=0 // pred_check
    _
  $region3: #{_forward_jit.1} parent=0 // pred_check_branch
    %9 = sbr.rel (0) target = $region5
  $region4: #{_forward_jit.1} parent=0 // pred_region
    _
  $region5: #{_forward_jit.1} parent=0 // pred_fallthru
    _
  // Predicated region
  $region6: #{_forward_jit.1} parent=0 // pred_check
    _
  $region7: #{_forward_jit.1} parent=0 // pred_check_branch
    %11 = sbr.rel (0) target = $region9
  $region8: #{_forward_jit.1} parent=0 // pred_region
    _
  $region9: #{_forward_jit.1} parent=0 // pred_fallthru
    _
  // Predicated region
  $region10: #{_forward_jit.1} parent=0 // pred_check
    _
  $region11: #{_forward_jit.1} parent=0 // pred_check_branch
    %13 = sbr.rel (0) target = $region13
  $region12: #{_forward_jit.1} parent=0 // pred_region
    _
  $region13: #{_forward_jit.1} parent=0 // pred_fallthru
    _
  %v14 = vld [vmem:[%s0] sm:$0xff]
  %v15 = vld [vmem:[%s1] sm:$0xff]
  %v16 = vld [vmem:[%s1 + $0x8] sm:$0xff]
  %v17 = vld [vmem:[%s1 + $0x10] sm:$0xff]
  %v18 = vld [vmem:[%s1 + $0x18] sm:$0xff]
  %v19 = vld [vmem:[%s2] sm:$0xff]
  %v20 = vld [vmem:[%s2 + $0x8] sm:$0xff]
  %v21 = vld [vmem:[%s2 + $0x10] sm:$0xff]
  %v22 = vld [vmem:[%s2 + $0x18] sm:$0xff]
  %24 = vset.pattern.permute.xlu0 0
  %25 = vperm.xlu0 %24, %v19
  %v26 = vpop.permute.xlu0 %25
  %29 = vset.pattern.permute.xlu0 0
  %30 = vperm.xlu0 %29, %v20
  %v31 = vpop.permute.xlu0 %30
  %34 = vset.pattern.permute.xlu0 0
  %35 = vperm.xlu0 %34, %v21
  %v36 = vpop.permute.xlu0 %35
  %39 = vset.pattern.permute.xlu0 0
  %40 = vperm.xlu0 %39, %v22
  %v41 = vpop.permute.xlu0 %40
  %vm43 = vcmask 64512
  %v45 = vsel %vm43, %v15, 0
  %v48 = vsel %vm43, %v16, 0
  %v51 = vsel %vm43, %v17, 0
  %v54 = vsel %vm43, %v18, 0
  %56 = vmatpush.msra.mxu0 0.0
  %57 = vmatpush.msra.mxu0 0.0
  %58 = vmatpush.msra.mxu0 0.0
  %59 = vmatpush.msra.mxu0 0.0
  %60 = vmatpush.msra.mxu0 0.0
  %61 = vmatpush.msra.mxu0 0.0
  %62 = vmatpush.msra.mxu0 0.0
  %63 = vmatpush.msra.mxu0 0.0
  %64 = vmatpush.msra.mxu0 0.0
  %65 = vmatpush.msra.mxu0 0.0
  %66 = vmatpush.msra.mxu0 0.0
  %67 = vmatpush.msra.mxu0 0.0
  %68 = vmatpush.msra.mxu0 0.0
  %69 = vmatpush.msra.mxu0 0.0
  %70 = vmatpush.msra.mxu0 0.0
  %71 = vmatpush.msra.mxu0 %v14
  %72 = vmatmul.f32.gmra.mxu0 %v45
  %v73 = vpop.f32.mrf.mxu0
  %v74 = vadd.f32 %v26, %v73
  %75 = vmatmul.f32.gmra.mxu0 %v48
  %v76 = vpop.f32.mrf.mxu0
  %v77 = vadd.f32 %v31, %v76
  %78 = vmatmul.f32.gmra.mxu0 %v51
  %v79 = vpop.f32.mrf.mxu0
  %v80 = vadd.f32 %v36, %v79
  %81 = vmatmul.f32.gmra.mxu0 %v54
  %v82 = vpop.f32.mrf.mxu0
  %v83 = vadd.f32 %v41, %v82
  %84 = vdwg.mxu0
  %v85 = vtanh.pop %v74
  %v86 = vtanh.pop %v77
  %v87 = vtanh.pop %v80
  %v88 = vtanh.pop %v83
  %v89 = vld [vmem:[%s1 + $0x20] sm:$0xff]
  %v90 = vld [vmem:[%s2 + $0x20] sm:$0xff]
  %92 = vset.pattern.permute.xlu0 0
  %93 = vperm.xlu0 %92, %v90
  %v94 = vpop.permute.xlu0 %93
  %vm96 = vcmask 261120
  %v98 = vsel %vm96, %v89, 0
  %100 = vmatpush.msra.mxu0 0.0
  %101 = vmatpush.msra.mxu0 0.0
  %102 = vmatpush.msra.mxu0 0.0
  %103 = vmatpush.msra.mxu0 0.0
  %104 = vmatpush.msra.mxu0 0.0
  %105 = vmatpush.msra.mxu0 0.0
  %106 = vmatpush.msra.mxu0 0.0
  %107 = vmatpush.msra.mxu0 0.0
  %108 = vmatpush.msra.mxu0 0.0
  %109 = vmatpush.msra.mxu0 0.0
  %110 = vmatpush.msra.mxu0 0.0
  %111 = vmatpush.msra.mxu0 0.0
  %112 = vmatpush.msra.mxu0 %v88
  %113 = vmatpush.msra.mxu0 %v87
  %114 = vmatpush.msra.mxu0 %v86
  %115 = vmatpush.msra.mxu0 %v85
  %116 = vmatmul.f32.gmra.mxu0 %v98
  %v117 = vpop.f32.mrf.mxu0
  %v118 = vadd.f32 %v94, %v117
  %119 = vdwg.mxu0
  %v120 = vmul.f32 %v118, 0.5
  %v121 = vtanh.pop %v120
  %v122 = vadd.f32 %v121, 1.0
  %v123 = vmul.f32 %v122, 0.5
  %v124 = vmul.f32 %v14, %v123
  %v125 = vld [vmem:[%s1 + $0x28] sm:$0xff]
  %v126 = vld [vmem:[%s1 + $0x30] sm:$0xff]
  %v127 = vld [vmem:[%s1 + $0x38] sm:$0xff]
  %v128 = vld [vmem:[%s1 + $0x40] sm:$0xff]
  %v129 = vld [vmem:[%s2 + $0x28] sm:$0xff]
  %v130 = vld [vmem:[%s2 + $0x30] sm:$0xff]
  %v131 = vld [vmem:[%s2 + $0x38] sm:$0xff]
  %v132 = vld [vmem:[%s2 + $0x40] sm:$0xff]
  %134 = vset.pattern.permute.xlu0 0
  %135 = vperm.xlu0 %134, %v129
  %v136 = vpop.permute.xlu0 %135
  %139 = vset.pattern.permute.xlu0 0
  %140 = vperm.xlu0 %139, %v130
  %v141 = vpop.permute.xlu0 %140
  %144 = vset.pattern.permute.xlu0 0
  %145 = vperm.xlu0 %144, %v131
  %v146 = vpop.permute.xlu0 %145
  %149 = vset.pattern.permute.xlu0 0
  %150 = vperm.xlu0 %149, %v132
  %v151 = vpop.permute.xlu0 %150
  %v154 = vsel %vm43, %v125, 0
  %v157 = vsel %vm43, %v126, 0
  %v160 = vsel %vm43, %v127, 0
  %v163 = vsel %vm43, %v128, 0
  %165 = vmatpush.msra.mxu0 0.0
  %166 = vmatpush.msra.mxu0 0.0
  %167 = vmatpush.msra.mxu0 0.0
  %168 = vmatpush.msra.mxu0 0.0
  %169 = vmatpush.msra.mxu0 0.0
  %170 = vmatpush.msra.mxu0 0.0
  %171 = vmatpush.msra.mxu0 0.0
  %172 = vmatpush.msra.mxu0 0.0
  %173 = vmatpush.msra.mxu0 0.0
  %174 = vmatpush.msra.mxu0 0.0
  %175 = vmatpush.msra.mxu0 0.0
  %176 = vmatpush.msra.mxu0 0.0
  %177 = vmatpush.msra.mxu0 0.0
  %178 = vmatpush.msra.mxu0 0.0
  %179 = vmatpush.msra.mxu0 0.0
  %180 = vmatpush.msra.mxu0 %v124
  %181 = vmatmul.f32.gmra.mxu0 %v154
  %v182 = vpop.f32.mrf.mxu0
  %v183 = vadd.f32 %v136, %v182
  %184 = vmatmul.f32.gmra.mxu0 %v157
  %v185 = vpop.f32.mrf.mxu0
  %v186 = vadd.f32 %v141, %v185
  %187 = vmatmul.f32.gmra.mxu0 %v160
  %v188 = vpop.f32.mrf.mxu0
  %v189 = vadd.f32 %v146, %v188
  %190 = vmatmul.f32.gmra.mxu0 %v163
  %v191 = vpop.f32.mrf.mxu0
  %v192 = vadd.f32 %v151, %v191
  %193 = vdwg.mxu0
  %v194 = vtanh.pop %v183
  %v195 = vtanh.pop %v186
  %v196 = vtanh.pop %v189
  %v197 = vtanh.pop %v192
  %v198 = vld [vmem:[%s1 + $0x48] sm:$0xff]
  %v199 = vld [vmem:[%s1 + $0x50] sm:$0xff]
  %v200 = vld [vmem:[%s1 + $0x58] sm:$0xff]
  %v201 = vld [vmem:[%s1 + $0x60] sm:$0xff]
  %v202 = vld [vmem:[%s2 + $0x48] sm:$0xff]
  %v203 = vld [vmem:[%s2 + $0x50] sm:$0xff]
  %v204 = vld [vmem:[%s2 + $0x58] sm:$0xff]
  %v205 = vld [vmem:[%s2 + $0x60] sm:$0xff]
  %207 = vset.pattern.permute.xlu0 0
  %208 = vperm.xlu0 %207, %v202
  %v209 = vpop.permute.xlu0 %208
  %212 = vset.pattern.permute.xlu0 0
  %213 = vperm.xlu0 %212, %v203
  %v214 = vpop.permute.xlu0 %213
  %217 = vset.pattern.permute.xlu0 0
  %218 = vperm.xlu0 %217, %v204
  %v219 = vpop.permute.xlu0 %218
  %222 = vset.pattern.permute.xlu0 0
  %223 = vperm.xlu0 %222, %v205
  %v224 = vpop.permute.xlu0 %223
  %v227 = vsel %vm96, %v198, 0
  %v230 = vsel %vm96, %v199, 0
  %v233 = vsel %vm96, %v200, 0
  %v236 = vsel %vm96, %v201, 0
  %238 = vmatpush.msra.mxu0 0.0
  %239 = vmatpush.msra.mxu0 0.0
  %240 = vmatpush.msra.mxu0 0.0
  %241 = vmatpush.msra.mxu0 0.0
  %242 = vmatpush.msra.mxu0 0.0
  %243 = vmatpush.msra.mxu0 0.0
  %244 = vmatpush.msra.mxu0 0.0
  %245 = vmatpush.msra.mxu0 0.0
  %246 = vmatpush.msra.mxu0 0.0
  %247 = vmatpush.msra.mxu0 0.0
  %248 = vmatpush.msra.mxu0 0.0
  %249 = vmatpush.msra.mxu0 0.0
  %250 = vmatpush.msra.mxu0 %v197
  %251 = vmatpush.msra.mxu0 %v196
  %252 = vmatpush.msra.mxu0 %v195
  %253 = vmatpush.msra.mxu0 %v194
  %254 = vmatmul.f32.gmra.mxu0 %v227
  %v255 = vpop.f32.mrf.mxu0
  %v256 = vadd.f32 %v209, %v255
  %257 = vmatmul.f32.gmra.mxu0 %v230
  %v258 = vpop.f32.mrf.mxu0
  %v259 = vadd.f32 %v214, %v258
  %260 = vmatmul.f32.gmra.mxu0 %v233
  %v261 = vpop.f32.mrf.mxu0
  %v262 = vadd.f32 %v219, %v261
  %263 = vmatmul.f32.gmra.mxu0 %v236
  %v264 = vpop.f32.mrf.mxu0
  %v265 = vadd.f32 %v224, %v264
  %266 = vdwg.mxu0
  %v267 = vtanh.pop %v256
  %v268 = vtanh.pop %v259
  %v269 = vtanh.pop %v262
  %v270 = vtanh.pop %v265
  %v271 = vld [vmem:[%s1 + $0x68] sm:$0x1]
  %v272 = vld [vmem:[%s2 + $0x68] sm:$0x1]
  %274 = vset.pattern.permute.xlu0 0
  %275 = vperm.xlu0 %274, %v272
  %v276 = vpop.permute.xlu0 %275
  %v279 = vsel %vm96, %v271, 0
  %281 = vmatpush.msra.mxu0 0.0
  %282 = vmatpush.msra.mxu0 0.0
  %283 = vmatpush.msra.mxu0 0.0
  %284 = vmatpush.msra.mxu0 0.0
  %285 = vmatpush.msra.mxu0 0.0
  %286 = vmatpush.msra.mxu0 0.0
  %287 = vmatpush.msra.mxu0 0.0
  %288 = vmatpush.msra.mxu0 0.0
  %289 = vmatpush.msra.mxu0 0.0
  %290 = vmatpush.msra.mxu0 0.0
  %291 = vmatpush.msra.mxu0 0.0
  %292 = vmatpush.msra.mxu0 0.0
  %293 = vmatpush.msra.mxu0 %v270
  %294 = vmatpush.msra.mxu0 %v269
  %295 = vmatpush.msra.mxu0 %v268
  %296 = vmatpush.msra.mxu0 %v267
  %297 = vmatmul.f32.gmra.mxu0 %v279
  %v298 = vpop.f32.mrf.mxu0
  %v299 = vadd.f32 %v276, %v298
  %300 = vdwg.mxu0
  %v301 = vperm.slane %v299, 0
  %302 = vst [vmem:[%s3] sm:$0xff] %v123
  %303 = vst [vmem:[%s3 + $0x8] sm:$0xff] %v301
  // Predicated region
  $region14: #{_forward_jit.1} parent=0 // pred_check
    _
  $region15: #{_forward_jit.1} parent=0 // pred_check_branch
    %305 = sbr.rel (0) target = $region17
  $region16: #{_forward_jit.1} parent=0 // pred_region
    _
  $region17: #{_forward_jit.1} parent=0 // pred_fallthru
    _
  // Predicated region
  $region18: #{_forward_jit.1} parent=0 // pred_check
    _
  $region19: #{_forward_jit.1} parent=0 // pred_check_branch
    %307 = sbr.rel (0) target = $region21
  $region20: #{_forward_jit.1} parent=0 // pred_region
    _
  $region21: #{_forward_jit.1} parent=0 // pred_fallthru
    _

</llo_original>
